<compile_context>
chip_gen: v7x
topology: tpu7x:2x2x1
jax: 0.10.0
libtpu: 0.0.40
codegen_flags: <defaults>
</compile_context>

<pallas_src>
import functools

import jax
import jax.numpy as jnp
from jax import lax
from jax.experimental import pallas as pl
from jax.experimental.pallas import tpu as pltpu

LANES = 128
SUBLANES = 8
_MIN_PALLAS_ELEMS = 256 * 1024  # ~1 MiB of f32 per input


def _pick_tile_rows():
    """Per-generation streaming block size (rows of a (rows,128) f32 slab)."""
    try:
        kind = jax.devices()[0].device_kind.lower()
    except Exception:  # pragma: no cover - defensive
        kind = ""
    if ("v6" in kind) or ("v7" in kind) or ("7x" in kind):
        # 4 MiB per input block; 2 inputs x 2 buffers = 16 MiB (< 32 MiB scoped).
        return 8192
    # v5e and older: 2 MiB per block; 8 MiB total stays under the 16 MiB default.
    return 4096


def _rmse_partial_kernel(yhat_ref, y_ref, acc_ref, *, tile_rows, valid_rows,
                         blocks_per_core, needs_mask):
    """One grid step: fold a tile's squared diffs into a resident (8,128) acc."""
    c = pl.program_id(0)  # core-parallel axis
    i = pl.program_id(1)  # per-core block stream ("arbitrary")

    @pl.when(i == 0)
    def _():
        acc_ref[...] = jnp.zeros_like(acc_ref)

    d = yhat_ref[...].astype(jnp.float32) - y_ref[...].astype(jnp.float32)
    sq = d * d

    def _accumulate(vals):
        # VPU-only partial reduction: collapse sublane groups via elementwise
        # vreg adds; the cheap cross-lane reduce happens outside the kernel.
        folded = vals.reshape(tile_rows // SUBLANES, SUBLANES, LANES)
        acc_ref[0, :, :] += jnp.sum(folded, axis=0)

    if not needs_mask:
        # Every block is full: no iota/compare/select on the hot path at all.
        _accumulate(sq)
    else:
        block_start = (c * blocks_per_core + i) * tile_rows
        is_full = block_start + tile_rows <= valid_rows

        @pl.when(is_full)
        def _():
            _accumulate(sq)

        @pl.when(jnp.logical_not(is_full))
        def _():
            # Ragged last block (and any fully-overshooting block on the last
            # core): mask rows past the end of the real slab.  Keep the select
            # (not a multiply) so OOB NaN/Inf garbage cannot leak.
            row_ids = lax.broadcasted_iota(jnp.int32, (tile_rows, LANES), 0)
            in_bounds = (block_start + row_ids) < valid_rows
            _accumulate(jnp.where(in_bounds, sq, 0.0))


def rmse_loss(yhat, y, *, use_pallas=None):
    assert yhat.shape == y.shape, "yhat and y must have identical shapes"
    n_valid = yhat.size

    if use_pallas is None:
        use_pallas = n_valid >= _MIN_PALLAS_ELEMS
    if not use_pallas:
        # Tiny inputs: XLA fuses the elementwise+reduce better than a custom call.
        d = yhat.astype(jnp.float32) - y.astype(jnp.float32)
        return jnp.sqrt(jnp.mean(d * d))

    yf = jnp.ravel(yhat)
    xf = jnp.ravel(y)

    # Pad with zeros only when the flat size is not already a multiple of 8*128
    # (at most 1023 extra elements) so the (rows, 128) view is layout-legal.
    # Padded zeros add 0 to the sum; the mean divides by n_valid.
    slab = SUBLANES * LANES
    padded = ((n_valid + slab - 1) // slab) * slab
    pad = padded - n_valid
    if pad:
        yf = jnp.pad(yf, (0, pad))
        xf = jnp.pad(xf, (0, pad))

    rows = padded // LANES
    yf = yf.reshape(rows, LANES)
    xf = xf.reshape(rows, LANES)

    tile_rows = min(_pick_tile_rows(), rows)  # rows is a multiple of 8
    num_blocks = pl.cdiv(rows, tile_rows)
    num_cores = 2 if num_blocks >= 2 else 1
    blocks_per_core = pl.cdiv(num_blocks, num_cores)
    # Mask is only needed when the last block is ragged or one core overshoots.
    needs_mask = (rows % tile_rows != 0) or (num_cores * blocks_per_core != num_blocks)

    def in_map(c, i):
        g = c * blocks_per_core + i
        # Clamp a possible overshoot block to the last valid block; its
        # contribution is fully masked to zero inside the kernel.
        return (jnp.minimum(g, num_blocks - 1), 0)

    kernel = functools.partial(
        _rmse_partial_kernel, tile_rows=tile_rows, valid_rows=rows,
        blocks_per_core=blocks_per_core, needs_mask=needs_mask)

    out_bytes = num_cores * SUBLANES * LANES * 4
    cost = pl.CostEstimate(
        flops=3 * n_valid,
        transcendentals=0,
        bytes_accessed=2 * rows * LANES * yf.dtype.itemsize + out_bytes,
    )

    partials = pl.pallas_call(
        kernel,
        out_shape=jax.ShapeDtypeStruct((num_cores, SUBLANES, LANES), jnp.float32),
        grid_spec=pltpu.PrefetchScalarGridSpec(
            num_scalar_prefetch=0,
            grid=(num_cores, blocks_per_core),
            in_specs=[
                pl.BlockSpec((tile_rows, LANES), in_map),
                pl.BlockSpec((tile_rows, LANES), in_map),
            ],
            # One resident accumulator block per core; no per-step HBM partials.
            out_specs=pl.BlockSpec((1, SUBLANES, LANES), lambda c, i: (c, 0, 0)),
        ),
        compiler_params=pltpu.CompilerParams(
            dimension_semantics=("parallel", "arbitrary"),
            vmem_limit_bytes=32 * 1024 * 1024,
        ),
        cost_estimate=cost,
    )(yf, xf)

    total = jnp.sum(partials, dtype=jnp.float32)
    return jnp.sqrt(total / jnp.float32(n_valid))


if __name__ == "__main__":
    key = jax.random.PRNGKey(0)
    k1, k2, k3, k4 = jax.random.split(key, 4)

    # RMSELoss has no parameters; inputs chosen as small NCHW-like tensors.
    yhat = jax.random.normal(k1, (2, 4, 16, 16), dtype=jnp.float32)
    y = jax.random.normal(k2, (2, 4, 16, 16), dtype=jnp.float32)

    # Force the Pallas path on the module-shaped input (auto mode would take
    # the small-input fallback here).
    loss = jax.block_until_ready(rmse_loss(yhat, y, use_pallas=True))
    ref = jnp.sqrt(jnp.mean((yhat - y) ** 2))
    assert jnp.allclose(loss, ref, rtol=1e-5, atol=1e-6), (loss, ref)

    # Auto mode (fallback path) must agree.
    loss_auto = jax.block_until_ready(rmse_loss(yhat, y))
    assert jnp.allclose(loss_auto, ref, rtol=1e-5, atol=1e-6), (loss_auto, ref)

    # Larger ragged input: exercises multi-block streaming, the resident
    # per-core accumulators, the pl.when-gated tail mask and the 2-core split.
    n_big = 1_234_567  # not a multiple of 1024 -> padded tail + masked block
    a = jax.random.normal(k3, (n_big,), dtype=jnp.float32)
    b = jax.random.normal(k4, (n_big,), dtype=jnp.float32)
    loss_big = jax.block_until_ready(rmse_loss(a, b, use_pallas=True))
    ref_big = jnp.sqrt(jnp.mean((a - b) ** 2))
    assert jnp.allclose(loss_big, ref_big, rtol=1e-4, atol=1e-6), (loss_big, ref_big)

    print("KERNEL_OK")
</pallas_src>

<mosaic_0001>
module attributes {stable_mosaic.version = 11 : i64} {
  func.func @_rmse_partial_kernel(%arg0: i32, %arg1: i32, %arg2: memref<16x128xf32, #tpu.memory_space<vmem>>, %arg3: memref<16x128xf32, #tpu.memory_space<vmem>>, %arg4: memref<1x8x128xf32, #tpu.memory_space<vmem>>) attributes {dimension_semantics = [#tpu.dimension_semantics<parallel>, #tpu.dimension_semantics<arbitrary>], iteration_bounds = array<i64: 1, 1>, scalar_prefetch = 0 : i64, scratch_operands = 0 : i64, tpu.core_type = #tpu.core_type<tc>, window_params = [{transform_indices = @transform_0, window_bounds = array<i64: 16, 128>}, {transform_indices = @transform_1, window_bounds = array<i64: 16, 128>}, {transform_indices = @transform_2, window_bounds = array<i64: 1, 8, 128>}]} {
    %c0_i32 = arith.constant 0 : i32
    %0 = arith.cmpi eq, %arg1, %c0_i32 : i32
    %1 = arith.extui %0 : i1 to i32
    %c0_i32_0 = arith.constant 0 : i32
    %2 = arith.cmpi ne, %1, %c0_i32_0 : i32
    scf.if %2 {
      %cst_10 = arith.constant 0.000000e+00 : f32
      %15 = vector.broadcast %cst_10 : f32 to vector<1x8x128xf32>
      %c0_11 = arith.constant 0 : index
      %c0_12 = arith.constant 0 : index
      %c0_13 = arith.constant 0 : index
      %16 = vector.load %arg4[%c0_11, %c0_12, %c0_13] : memref<1x8x128xf32, #tpu.memory_space<vmem>>, vector<1x8x128xf32>
      tpu.vector_store %arg4[%c0_11, %c0_12, %c0_13], %15 {strides = array<i32>} : memref<1x8x128xf32, #tpu.memory_space<vmem>>, vector<1x8x128xf32>,
    } else {
    }
    %c0 = arith.constant 0 : index
    %c0_1 = arith.constant 0 : index
    %3 = vector.load %arg2[%c0, %c0_1] : memref<16x128xf32, #tpu.memory_space<vmem>>, vector<16x128xf32>
    %c0_2 = arith.constant 0 : index
    %c0_3 = arith.constant 0 : index
    %4 = vector.load %arg3[%c0_2, %c0_3] : memref<16x128xf32, #tpu.memory_space<vmem>>, vector<16x128xf32>
    %5 = arith.subf %3, %4 : vector<16x128xf32>
    %6 = arith.mulf %5, %5 : vector<16x128xf32>
    %7 = vector.shape_cast %6 : vector<16x128xf32> to vector<2x8x128xf32>
    %c0_4 = arith.constant 0 : index
    %c0_5 = arith.constant 0 : index
    %c0_6 = arith.constant 0 : index
    %8 = vector.load %arg4[%c0_4, %c0_5, %c0_6] : memref<1x8x128xf32, #tpu.memory_space<vmem>>, vector<1x8x128xf32>
    %9 = vector.shape_cast %8 : vector<1x8x128xf32> to vector<8x128xf32>
    %cst = arith.constant dense<0.000000e+00> : vector<8x128xf32>
    %10 = vector.multi_reduction <add>, %7, %cst [0] : vector<2x8x128xf32> to vector<8x128xf32>
    %11 = arith.addf %9, %10 : vector<8x128xf32>
    %c0_7 = arith.constant 0 : index
    %c0_8 = arith.constant 0 : index
    %c0_9 = arith.constant 0 : index
    %12 = vector.load %arg4[%c0_7, %c0_8, %c0_9] : memref<1x8x128xf32, #tpu.memory_space<vmem>>, vector<1x8x128xf32>
    %13 = vector.shape_cast %12 : vector<1x8x128xf32> to vector<8x128xf32>
    %14 = vector.shape_cast %11 : vector<8x128xf32> to vector<1x8x128xf32>
    tpu.vector_store %arg4[%c0_7, %c0_8, %c0_9], %14 {strides = array<i32>} : memref<1x8x128xf32, #tpu.memory_space<vmem>>, vector<1x8x128xf32>,
    return
  }
  func.func @transform_0(%arg0: i32, %arg1: i32) -> (i32, i32) {
    %c1_i32 = arith.constant 1 : i32
    %0 = arith.muli %arg0, %c1_i32 : i32
    %1 = arith.addi %0, %arg1 : i32
    %c0_i32 = arith.constant 0 : i32
    %2 = arith.minsi %1, %c0_i32 : i32
    %c0_i32_0 = arith.constant 0 : i32
    %c0_i32_1 = arith.constant 0 : i32
    return %2, %c0_i32_0 : i32, i32
  }
  func.func @transform_1(%arg0: i32, %arg1: i32) -> (i32, i32) {
    %c1_i32 = arith.constant 1 : i32
    %0 = arith.muli %arg0, %c1_i32 : i32
    %1 = arith.addi %0, %arg1 : i32
    %c0_i32 = arith.constant 0 : i32
    %2 = arith.minsi %1, %c0_i32 : i32
    %c0_i32_0 = arith.constant 0 : i32
    %c0_i32_1 = arith.constant 0 : i32
    return %2, %c0_i32_0 : i32, i32
  }
  func.func @transform_2(%arg0: i32, %arg1: i32) -> (i32, i32, i32) {
    %c0_i32 = arith.constant 0 : i32
    %c0_i32_0 = arith.constant 0 : i32
    %c0_i32_1 = arith.constant 0 : i32
    return %arg0, %c0_i32, %c0_i32_0 : i32, i32, i32
  }
}

</mosaic_0001>

<llo_original>
// kernel: tpu_custom_call.1
$region0: #{tpu_custom_call.1}
  #allocation0 [shape = 'u32[]', space=smem, size = 0x4, offset = 0x4, fixed_abs, tag = 'smem constant byte address 0x4 - core index']
  #allocation1 [shape = 'u32[144,128]{1,0:T(1,128)}', space=vmem, size = 0x12000, scoped, tag = 'internal scratch']
  %s0 = inlined_call_operand.hbm [shape: f32[16,128], index: 0, kind: input, shape index: {}]
  %s1 = inlined_call_operand.hbm [shape: f32[16,128], index: 1, kind: input, shape index: {}]
  %s2 = inlined_call_operand.hbm [shape: f32[1,8,128], index: 2, kind: output, shape index: {}]
  %s3 = sld [smem:[#allocation0]]
  $region30: #{tpu_custom_call.1} parent=0
    _
  %s5 = ssub.s32 1, %s3
  %s6 = scalar_select 0, %s5, %s3
  $region1: #{tpu_custom_call.1} parent=0
    #allocation2 [shape = 'u8[8192]{0}', space=vmem, size = 0x2000, scoped, tag = 'input window, operand 0, single buffered']
    #allocation3 [shape = 's32[1]{0}', space=sflag, size = 0x4, scoped, tag = 'scoped memory for tpu_custom_call.1']
    #allocation4 [shape = 's32[1]{0}', space=sflag, size = 0x4, scoped, tag = 'scoped memory for tpu_custom_call.1']
    #allocation5 [shape = 'u8[8192]{0}', space=vmem, size = 0x2000, scoped, tag = 'input window, operand 1, single buffered']
    #allocation6 [shape = 's32[1]{0}', space=sflag, size = 0x4, scoped, tag = 'scoped memory for tpu_custom_call.1']
    #allocation7 [shape = 'u8[4096]{0}', space=vmem, size = 0x1000, scoped, tag = 'output window, operand 0, single buffered']
    %7 = vsyncpa [#allocation3], 0
    %8 = vsyncpa [#allocation6], 0
    %9 = vsyncpa [#allocation4], 0
    // Predicated region
    $region2: #{tpu_custom_call.1} parent=1 // pred_check
      _
    $region3: #{tpu_custom_call.1} parent=1 // pred_check_branch
      %11 = sbr.rel (0) target = $region5
    $region4: #{tpu_custom_call.1} parent=1 // pred_region
      %s12 = sadd.s32 0, 0
      %p13 = scmp.lt.s32.totalorder %s12, 0
      %s14 = scalar_select %p13, %s12, 0
      %s15 = smul.u32 2, %s14
      %s17 = ssub.s32 256, 256
      %18 = vsyncadd [#allocation3], %s17
      %s19 = smul.addr %s15, 128
      %s20 = scalar_lea.hbm %s0, %s19
      %s21 = sshll.u32 [#allocation2], 4
      %s22 = int_to_ptr.vmem [resolvable:$true] %s21
      %27 = dma.hbm_to_vmem [thread:$0]  %s20, 256, %s22, [#allocation3], 128, 128, 8
    $region5: #{tpu_custom_call.1} parent=1 // pred_fallthru
      _
    // Predicated region
    $region6: #{tpu_custom_call.1} parent=1 // pred_check
      _
    $region7: #{tpu_custom_call.1} parent=1 // pred_check_branch
      %29 = sbr.rel (0) target = $region9
    $region8: #{tpu_custom_call.1} parent=1 // pred_region
      %s30 = sadd.s32 0, 0
      %p31 = scmp.lt.s32.totalorder %s30, 0
      %s32 = scalar_select %p31, %s30, 0
      %s33 = smul.u32 2, %s32
      %s35 = ssub.s32 256, 256
      %36 = vsyncadd [#allocation6], %s35
      %s37 = smul.addr %s33, 128
      %s38 = scalar_lea.hbm %s1, %s37
      %s39 = sshll.u32 [#allocation5], 4
      %s40 = int_to_ptr.vmem [resolvable:$true] %s39
      %45 = dma.hbm_to_vmem [thread:$0]  %s38, 256, %s40, [#allocation6], 128, 128, 8
    $region9: #{tpu_custom_call.1} parent=1 // pred_fallthru
      _
    // Predicated region
    $region10: #{tpu_custom_call.1} parent=1 // pred_check
      _
    $region11: #{tpu_custom_call.1} parent=1 // pred_check_branch
      %47 = sbr.rel (0) target = $region13
    $region12: #{tpu_custom_call.1} parent=1 // pred_region
      %48 = dma.done [#allocation3], 256
    $region13: #{tpu_custom_call.1} parent=1 // pred_fallthru
      _
    // Predicated region
    $region14: #{tpu_custom_call.1} parent=1 // pred_check
      _
    $region15: #{tpu_custom_call.1} parent=1 // pred_check_branch
      %50 = sbr.rel (0) target = $region17
    $region16: #{tpu_custom_call.1} parent=1 // pred_region
      %51 = dma.done [#allocation6], 256
    $region17: #{tpu_custom_call.1} parent=1 // pred_fallthru
      _
    %s52 = sadd.s32 0, 0
    %p53 = scmp.lt.s32.totalorder %s52, 0
    %s54 = scalar_select %p53, %s52, 0
    %s55 = smul.u32 2, %s54
    %s56 = sadd.s32 0, 0
    %p57 = scmp.lt.s32.totalorder %s56, 0
    %s58 = scalar_select %p57, %s56, 0
    %s59 = smul.u32 2, %s58
    %p60 = scmp.eq.s32.totalorder 0, 0
    // Predicated region
    $region18: #{tpu_custom_call.1} parent=1 // pred_check
      %p61 = pneg %p60
    $region19: #{tpu_custom_call.1} parent=1 // pred_check_branch
      %63 = sbr.rel (%p61) target = $region21
    $region20: #{tpu_custom_call.1} parent=1 // pred_region
      %64 = vst [vmem:[#allocation7] sm:$0xff] 0.0
    $region21: #{tpu_custom_call.1} parent=1 // pred_fallthru
      _
    %v65 = vld [vmem:[#allocation2] sm:$0xff]
    %v66 = vld [vmem:[#allocation2 + $0x8] sm:$0xff]
    %v67 = vld [vmem:[#allocation5] sm:$0xff]
    %v68 = vld [vmem:[#allocation5 + $0x8] sm:$0xff]
    %v69 = vsub.f32 %v65, %v67
    %v70 = vsub.f32 %v66, %v68
    %v71 = vmul.f32 %v69, %v69
    %v72 = vmul.f32 %v70, %v70
    %v73 = vld [vmem:[#allocation7] sm:$0xff]
    %v74 = vadd.f32 %v71, %v72
    %v75 = vadd.f32 %v73, %v74
    %76 = vst [vmem:[#allocation7] sm:$0xff] %v75
    // Predicated region
    $region22: #{tpu_custom_call.1} parent=1 // pred_check
      _
    $region23: #{tpu_custom_call.1} parent=1 // pred_check_branch
      %78 = sbr.rel (0) target = $region25
    $region24: #{tpu_custom_call.1} parent=1 // pred_region
      %s80 = ssub.s32 128, 128
      %81 = vsyncadd [#allocation4], %s80
      %s83 = sshll.u32 [#allocation7], 4
      %s84 = int_to_ptr.vmem [resolvable:$true] %s83
      %86 = dma.vmem_to_hbm [thread:$0]  %s84, 128, %s2, [#allocation4]
    $region25: #{tpu_custom_call.1} parent=1 // pred_fallthru
      _
    // Predicated region
    $region26: #{tpu_custom_call.1} parent=1 // pred_check
      _
    $region27: #{tpu_custom_call.1} parent=1 // pred_check_branch
      %88 = sbr.rel (0) target = $region29
    $region28: #{tpu_custom_call.1} parent=1 // pred_region
      %89 = dma.done [#allocation4], 128
    $region29: #{tpu_custom_call.1} parent=1 // pred_fallthru
      _
    %90 = vsyncpa [#allocation3], 1
    %91 = vsyncpa [#allocation6], 1
    %92 = vsyncpa [#allocation4], 1

</llo_original>
